<compile_context>
chip_gen: v7x
topology: tpu7x:2x2x1
jax: 0.10.0
libtpu: 0.0.40
codegen_flags: <defaults>
</compile_context>

<pallas_src>
import math
from functools import partial

import jax
import jax.numpy as jnp
from jax.experimental import pallas as pl
from jax.experimental.pallas import tpu as pltpu


def _round_up(x, m):
    return ((x + m - 1) // m) * m


def _fused_mlp_kernel(x_ref, w1_ref, b1_ref, w2_ref, b2_ref, o_ref):
    # x_ref : [tb, GK1p]   activation tile (one batch tile, one network group)
    # w1_ref: [GK1p, GH]   group block-diagonal, pre-transposed -> plain matmul, no .T
    # b1_ref: [1, GH]
    # w2_ref: [GH, GOp]    group block-diagonal, pre-transposed, lane-padded columns
    # b2_ref: [1, GOp]
    # o_ref : [tb, GOp]    single lane-dense store
    x = x_ref[...]
    h = jnp.dot(x, w1_ref[...], preferred_element_type=jnp.float32) + b1_ref[...]
    h = jnp.maximum(h, 0.0)                              # nn.ReLU between the two MultivarLinear
    out = jnp.dot(h, w2_ref[...], preferred_element_type=jnp.float32) + b2_ref[...]
    o_ref[...] = out.astype(o_ref.dtype)


def _grouped_block_diag_t(w, group_size):
    """[N, O, I] per-network weights -> [N//G, G*I, G*O] per-group block-diag of w[n].T.

    Built with zeros + .at[].set (scatter of parameter-sized data into a G-x-parameter
    buffer), not a dense N^2 broadcast-multiply.
    """
    N, O, I = w.shape
    G = group_size
    NG = N // G
    wt = jnp.swapaxes(w, -1, -2).reshape(NG, G, I, O)     # [NG, G, I, O]
    bd = jnp.zeros((NG, G, I, G, O), dtype=w.dtype)
    j = jnp.arange(G)
    # bd[ng, j, :, j, :] = wt[ng, j]  (advanced-index result shape is (G, NG, I, O))
    bd = bd.at[:, j, :, j, :].set(jnp.swapaxes(wt, 0, 1))
    return bd.reshape(NG, G * I, G * O)


def _pick_group_size(N, D_in, H, D_out, target=256):
    """Largest divisor G of N with G * max(dim) <= target (falls back to 1)."""
    md = max(D_in, H, D_out, 1)
    best = 1
    for g in range(1, N + 1):
        if N % g == 0 and g * md <= target:
            best = g
    return best


def prepare_multivar_mlp(w1, b1, w2, b2, lr_mul=1.0, group_size=None):
    """One-time parameter prep: fold lr_mul, pre-transpose, group block-diag, lane-pad.

    Hoist this out of the per-step forward whenever the weights are static.
    w1: [N, H, D_in]; b1: [N, H]; w2: [N, D_out, H]; b2: [N, D_out].
    """
    N, H, D_in = w1.shape
    D_out = w2.shape[1]
    G = group_size if group_size is not None else _pick_group_size(N, D_in, H, D_out)
    NG = N // G
    GH = G * H
    GK1 = G * D_in
    # x-column width per group only needs 128-alignment when there is more than one group
    # (otherwise the block covers the full array); output width is always lane-padded.
    GK1p = GK1 if NG == 1 else _round_up(GK1, 128)
    GOp = _round_up(G * D_out, 128)

    W1g = _grouped_block_diag_t(w1 * lr_mul, G)            # [NG, G*D_in, GH]
    W2g = _grouped_block_diag_t(w2 * lr_mul, G)            # [NG, GH, G*D_out]
    if GK1p > GK1:
        W1g = jnp.pad(W1g, ((0, 0), (0, GK1p - GK1), (0, 0)))
    if GOp > G * D_out:
        W2g = jnp.pad(W2g, ((0, 0), (0, 0), (0, GOp - G * D_out)))
    B1g = (b1 * lr_mul).reshape(NG, 1, GH)
    B2g = (b2 * lr_mul).reshape(NG, 1, G * D_out)
    if GOp > G * D_out:
        B2g = jnp.pad(B2g, ((0, 0), (0, 0), (0, GOp - G * D_out)))

    meta = dict(N=N, G=G, NG=NG, D_in=D_in, H=H, D_out=D_out,
                GK1=GK1, GK1p=GK1p, GH=GH, GOp=GOp)
    return (W1g, B1g, W2g, B2g), meta


def multivar_mlp_apply(x, params, meta):
    """x: [B, N, D_in] -> [B, N, D_out] via the fused grouped block-diagonal kernel."""
    W1g, B1g, W2g, B2g = params
    N, G, NG = meta["N"], meta["G"], meta["NG"]
    D_out = meta["D_out"]
    GK1, GK1p, GH, GOp = meta["GK1"], meta["GK1p"], meta["GH"], meta["GOp"]

    B = x.shape[0]

    # Activation prep: contiguous reshape (+ zero pad of per-group lane width / batch rows).
    x_g = x.reshape(B, NG, GK1)
    if GK1p > GK1:
        x_g = jnp.pad(x_g, ((0, 0), (0, 0), (0, GK1p - GK1)))
    x_flat = x_g.reshape(B, NG * GK1p)

    # Batch tile: multiple of 8; >= 2 batch grid steps once B >= 16 (v7x has 2 TensorCores
    # sharing the parallel grid); cap at 512 rows.
    B8 = _round_up(B, 8)
    nb_target = 2 if B8 >= 16 else 1
    tb = min(512, _round_up(-(-B8 // nb_target), 8))
    B_pad = _round_up(B8, tb)
    if B_pad > B:
        x_flat = jnp.pad(x_flat, ((0, B_pad - B), (0, 0)))
    nb = B_pad // tb

    # Explicit VMEM budget: double-buffered activation/output tiles and (small, grouped)
    # weight tiles + the f32 intermediate h, with 2x headroom. Covers v5e's 16 MiB default
    # scoped limit; capped at v7x's 64 MiB physical VMEM.
    itemsize = 4
    weight_bytes = (GK1p * GH + GH * GOp + GH + GOp) * itemsize
    act_bytes = tb * (GK1p + GOp) * itemsize
    h_bytes = tb * GH * itemsize
    needed = 2 * (weight_bytes + act_bytes) + h_bytes
    vmem_limit = int(min(max(2 * needed, 32 * 1024 * 1024), 64 * 1024 * 1024))

    out_flat = pl.pallas_call(
        _fused_mlp_kernel,
        out_shape=jax.ShapeDtypeStruct((B_pad, NG * GOp), x.dtype),
        grid_spec=pltpu.PrefetchScalarGridSpec(
            num_scalar_prefetch=0,
            # Group axis OUTER, batch axis INNER: weight block indices are constant across
            # the inner batch steps -> each group's weights are DMA'd once and stay resident.
            grid=(NG, nb),
            in_specs=[
                pl.BlockSpec((tb, GK1p), lambda g, i: (i, g)),
                pl.BlockSpec((None, GK1p, GH), lambda g, i: (g, 0, 0)),
                pl.BlockSpec((None, 1, GH), lambda g, i: (g, 0, 0)),
                pl.BlockSpec((None, GH, GOp), lambda g, i: (g, 0, 0)),
                pl.BlockSpec((None, 1, GOp), lambda g, i: (g, 0, 0)),
            ],
            out_specs=pl.BlockSpec((tb, GOp), lambda g, i: (i, g)),
        ),
        compiler_params=pltpu.CompilerParams(
            dimension_semantics=("parallel", "parallel"),
            vmem_limit_bytes=vmem_limit,
        ),
    )(x_flat, W1g, B1g, W2g, B2g)

    out = out_flat[:B].reshape(B, NG, GOp)[:, :, : G * D_out]
    return out.reshape(B, N, D_out)


def multivar_sequential(x, w1, b1, w2, b2, lr_mul=1.0):
    """Convenience wrapper (prep + apply). For static weights, hoist prepare_multivar_mlp()."""
    params, meta = prepare_multivar_mlp(w1, b1, w2, b2, lr_mul=lr_mul)
    return multivar_mlp_apply(x, params, meta)


def reference(x, w1, b1, w2, b2, lr_mul=1.0):
    # pure-JAX reference with the exact PyTorch MultivarLinear semantics
    h = jnp.einsum('bni,nhi->bnh', x, w1 * lr_mul) + (b1 * lr_mul)[None]
    h = jnp.maximum(h, 0.0)
    return jnp.einsum('bnh,noh->bno', h, w2 * lr_mul) + (b2 * lr_mul)[None]


if __name__ == "__main__":
    # shapes implied by the module: batch B, extra_dims=[N], per-network in/hidden/out dims
    B, N, D_in, H, D_out = 8, 4, 32, 64, 16
    lr_mul = 1.0

    key = jax.random.PRNGKey(0)
    kx, kw1, kb1, kw2, kb2 = jax.random.split(key, 5)

    # kaiming-uniform-style init (relu gain), deterministic; lr_mul folded in (== 1.0 here)
    bound1 = math.sqrt(2.0) * math.sqrt(3.0 / D_in)
    bound2 = math.sqrt(2.0) * math.sqrt(3.0 / H)
    w1 = jax.random.uniform(kw1, (N, H, D_in), jnp.float32, -bound1, bound1) / lr_mul
    w2 = jax.random.uniform(kw2, (N, D_out, H), jnp.float32, -bound2, bound2) / lr_mul
    b1 = jax.random.uniform(kb1, (N, H), jnp.float32, -0.1, 0.1)
    b2 = jax.random.uniform(kb2, (N, D_out), jnp.float32, -0.1, 0.1)

    x = jax.random.normal(kx, (B, N, D_in), jnp.float32)

    # Hoisted one-time parameter prep (grouped block-diag); only the apply runs per step.
    params, meta = prepare_multivar_mlp(w1, b1, w2, b2, lr_mul=lr_mul)
    apply_fn = jax.jit(partial(multivar_mlp_apply, meta=meta))

    out = jax.block_until_ready(apply_fn(x, params))
    ref = jax.block_until_ready(reference(x, w1, b1, w2, b2, lr_mul))

    assert out.shape == (B, N, D_out), out.shape
    assert jnp.allclose(out, ref, rtol=1e-5, atol=1e-5), float(jnp.max(jnp.abs(out - ref)))
    print("KERNEL_OK")
</pallas_src>

<mosaic_0001>
module attributes {stable_mosaic.version = 11 : i64} {
  func.func @_fused_mlp_kernel(%arg0: i32, %arg1: i32, %arg2: memref<8x128xf32, #tpu.memory_space<vmem>>, %arg3: memref<1x128x256xf32, #tpu.memory_space<vmem>>, %arg4: memref<1x1x256xf32, #tpu.memory_space<vmem>>, %arg5: memref<1x256x128xf32, #tpu.memory_space<vmem>>, %arg6: memref<1x1x128xf32, #tpu.memory_space<vmem>>, %arg7: memref<8x128xf32, #tpu.memory_space<vmem>>) attributes {dimension_semantics = [#tpu.dimension_semantics<parallel>, #tpu.dimension_semantics<parallel>], iteration_bounds = array<i64: 1, 1>, scalar_prefetch = 0 : i64, scratch_operands = 0 : i64, tpu.core_type = #tpu.core_type<tc>, window_params = [{transform_indices = @transform_0, window_bounds = array<i64: 8, 128>}, {transform_indices = @transform_1, window_bounds = array<i64: 1, 128, 256>}, {transform_indices = @transform_2, window_bounds = array<i64: 1, 1, 256>}, {transform_indices = @transform_3, window_bounds = array<i64: 1, 256, 128>}, {transform_indices = @transform_4, window_bounds = array<i64: 1, 1, 128>}, {transform_indices = @transform_5, window_bounds = array<i64: 8, 128>}]} {
    %c0 = arith.constant 0 : index
    %c0_0 = arith.constant 0 : index
    %0 = vector.load %arg2[%c0, %c0_0] : memref<8x128xf32, #tpu.memory_space<vmem>>, vector<8x128xf32>
    %c0_1 = arith.constant 0 : index
    %c0_2 = arith.constant 0 : index
    %c0_3 = arith.constant 0 : index
    %1 = vector.load %arg3[%c0_1, %c0_2, %c0_3] : memref<1x128x256xf32, #tpu.memory_space<vmem>>, vector<1x128x256xf32>
    %2 = vector.shape_cast %1 : vector<1x128x256xf32> to vector<128x256xf32>
    %cst = arith.constant dense<0.000000e+00> : vector<8x256xf32>
    %3 = tpu.matmul %0, %2, %cst {dimension_numbers = #tpu.dot_dimension_numbers<[1], [0], [0], [1], [0, 0, 1, 1], [], []>} : vector<8x128xf32>, vector<128x256xf32>, vector<8x256xf32> -> vector<8x256xf32>
    %c0_4 = arith.constant 0 : index
    %c0_5 = arith.constant 0 : index
    %c0_6 = arith.constant 0 : index
    %4 = vector.load %arg4[%c0_4, %c0_5, %c0_6] : memref<1x1x256xf32, #tpu.memory_space<vmem>>, vector<1x1x256xf32>
    %5 = vector.shape_cast %4 : vector<1x1x256xf32> to vector<1x256xf32>
    %6 = vector.broadcast %5 : vector<1x256xf32> to vector<8x256xf32>
    %7 = arith.addf %3, %6 : vector<8x256xf32>
    %cst_7 = arith.constant 0.000000e+00 : f32
    %8 = vector.broadcast %cst_7 : f32 to vector<8x256xf32>
    %9 = arith.maximumf %7, %8 : vector<8x256xf32>
    %c0_8 = arith.constant 0 : index
    %c0_9 = arith.constant 0 : index
    %c0_10 = arith.constant 0 : index
    %10 = vector.load %arg5[%c0_8, %c0_9, %c0_10] : memref<1x256x128xf32, #tpu.memory_space<vmem>>, vector<1x256x128xf32>
    %11 = vector.shape_cast %10 : vector<1x256x128xf32> to vector<256x128xf32>
    %cst_11 = arith.constant dense<0.000000e+00> : vector<8x128xf32>
    %12 = tpu.matmul %9, %11, %cst_11 {dimension_numbers = #tpu.dot_dimension_numbers<[1], [0], [0], [1], [0, 0, 1, 1], [], []>} : vector<8x256xf32>, vector<256x128xf32>, vector<8x128xf32> -> vector<8x128xf32>
    %c0_12 = arith.constant 0 : index
    %c0_13 = arith.constant 0 : index
    %c0_14 = arith.constant 0 : index
    %13 = vector.load %arg6[%c0_12, %c0_13, %c0_14] : memref<1x1x128xf32, #tpu.memory_space<vmem>>, vector<1x1x128xf32>
    %14 = vector.shape_cast %13 : vector<1x1x128xf32> to vector<1x128xf32>
    %15 = vector.broadcast %14 : vector<1x128xf32> to vector<8x128xf32>
    %16 = arith.addf %12, %15 : vector<8x128xf32>
    %c0_15 = arith.constant 0 : index
    %c0_16 = arith.constant 0 : index
    %17 = vector.load %arg7[%c0_15, %c0_16] : memref<8x128xf32, #tpu.memory_space<vmem>>, vector<8x128xf32>
    tpu.vector_store %arg7[%c0_15, %c0_16], %16 {strides = array<i32>} : memref<8x128xf32, #tpu.memory_space<vmem>>, vector<8x128xf32>,
    return
  }
  func.func @transform_0(%arg0: i32, %arg1: i32) -> (i32, i32) {
    %c0_i32 = arith.constant 0 : i32
    return %arg1, %arg0 : i32, i32
  }
  func.func @transform_1(%arg0: i32, %arg1: i32) -> (i32, i32, i32) {
    %c0_i32 = arith.constant 0 : i32
    %c0_i32_0 = arith.constant 0 : i32
    %c0_i32_1 = arith.constant 0 : i32
    return %arg0, %c0_i32, %c0_i32_0 : i32, i32, i32
  }
  func.func @transform_2(%arg0: i32, %arg1: i32) -> (i32, i32, i32) {
    %c0_i32 = arith.constant 0 : i32
    %c0_i32_0 = arith.constant 0 : i32
    %c0_i32_1 = arith.constant 0 : i32
    return %arg0, %c0_i32, %c0_i32_0 : i32, i32, i32
  }
  func.func @transform_3(%arg0: i32, %arg1: i32) -> (i32, i32, i32) {
    %c0_i32 = arith.constant 0 : i32
    %c0_i32_0 = arith.constant 0 : i32
    %c0_i32_1 = arith.constant 0 : i32
    return %arg0, %c0_i32, %c0_i32_0 : i32, i32, i32
  }
  func.func @transform_4(%arg0: i32, %arg1: i32) -> (i32, i32, i32) {
    %c0_i32 = arith.constant 0 : i32
    %c0_i32_0 = arith.constant 0 : i32
    %c0_i32_1 = arith.constant 0 : i32
    return %arg0, %c0_i32, %c0_i32_0 : i32, i32, i32
  }
  func.func @transform_5(%arg0: i32, %arg1: i32) -> (i32, i32) {
    %c0_i32 = arith.constant 0 : i32
    return %arg1, %arg0 : i32, i32
  }
}

</mosaic_0001>

<llo_original>
// kernel: multivar_mlp_apply.1
$region0: #{multivar_mlp_apply.1}
  #allocation0 [shape = 'u32[]', space=smem, size = 0x4, offset = 0x4, fixed_abs, tag = 'smem constant byte address 0x4 - core index']
  #allocation1 [shape = 'u32[144,128]{1,0:T(1,128)}', space=vmem, size = 0x12000, scoped, tag = 'internal scratch']
  %s0 = inlined_call_operand.vmem [shape: f32[8,128], index: 0, kind: input, shape index: {}]
  %s1 = inlined_call_operand.hbm [shape: f32[1,128,256], index: 1, kind: input, shape index: {}]
  %s2 = inlined_call_operand.vmem [shape: f32[1,1,256], index: 2, kind: input, shape index: {}]
  %s3 = inlined_call_operand.hbm [shape: f32[1,256,128], index: 3, kind: input, shape index: {}]
  %s4 = inlined_call_operand.vmem [shape: f32[1,1,128], index: 4, kind: input, shape index: {}]
  %s5 = inlined_call_operand.vmem [shape: f32[8,128], index: 5, kind: output, shape index: {}]
  %s6 = sld [smem:[#allocation0]]
  $region38: #{multivar_mlp_apply.1} parent=0
    _
  %s8 = ssub.s32 1, %s6
  %s9 = scalar_select 0, %s8, %s6
  $region1: #{multivar_mlp_apply.1} parent=0
    #allocation2 [shape = 'u8[131072]{0}', space=vmem, size = 0x20000, scoped, tag = 'input window, operand 1, single buffered']
    #allocation3 [shape = 's32[1]{0}', space=sflag, size = 0x4, scoped, tag = 'scoped memory for multivar_mlp_apply.1']
    #allocation4 [shape = 'u8[131072]{0}', space=vmem, size = 0x20000, scoped, tag = 'input window, operand 3, single buffered']
    #allocation5 [shape = 's32[1]{0}', space=sflag, size = 0x4, scoped, tag = 'scoped memory for multivar_mlp_apply.1']
    %10 = vsyncpa [#allocation3], 0
    %11 = vsyncpa [#allocation5], 0
    // Predicated region
    $region2: #{multivar_mlp_apply.1} parent=1 // pred_check
      _
    $region3: #{multivar_mlp_apply.1} parent=1 // pred_check_branch
      %13 = sbr.rel (0) target = $region5
    $region4: #{multivar_mlp_apply.1} parent=1 // pred_region
      _
    $region5: #{multivar_mlp_apply.1} parent=1 // pred_fallthru
      _
    // Predicated region
    $region6: #{multivar_mlp_apply.1} parent=1 // pred_check
      _
    $region7: #{multivar_mlp_apply.1} parent=1 // pred_check_branch
      %15 = sbr.rel (0) target = $region9
    $region8: #{multivar_mlp_apply.1} parent=1 // pred_region
      %s17 = ssub.s32 4096, 4096
      %18 = vsyncadd [#allocation3], %s17
      %s19 = sshll.u32 [#allocation2], 4
      %s20 = int_to_ptr.vmem [resolvable:$true] %s19
      %25 = dma.hbm_to_vmem [thread:$0]  %s1, 4096, %s20, [#allocation3], 256, 256, 16
    $region9: #{multivar_mlp_apply.1} parent=1 // pred_fallthru
      _
    // Predicated region
    $region10: #{multivar_mlp_apply.1} parent=1 // pred_check
      _
    $region11: #{multivar_mlp_apply.1} parent=1 // pred_check_branch
      %27 = sbr.rel (0) target = $region13
    $region12: #{multivar_mlp_apply.1} parent=1 // pred_region
      _
    $region13: #{multivar_mlp_apply.1} parent=1 // pred_fallthru
      _
    // Predicated region
    $region14: #{multivar_mlp_apply.1} parent=1 // pred_check
      _
    $region15: #{multivar_mlp_apply.1} parent=1 // pred_check_branch
      %29 = sbr.rel (0) target = $region17
    $region16: #{multivar_mlp_apply.1} parent=1 // pred_region
      %s31 = ssub.s32 4096, 4096
      %32 = vsyncadd [#allocation5], %s31
      %s33 = sshll.u32 [#allocation4], 4
      %s34 = int_to_ptr.vmem [resolvable:$true] %s33
      %39 = dma.hbm_to_vmem [thread:$0]  %s3, 4096, %s34, [#allocation5], 128, 128, 8
    $region17: #{multivar_mlp_apply.1} parent=1 // pred_fallthru
      _
    // Predicated region
    $region18: #{multivar_mlp_apply.1} parent=1 // pred_check
      _
    $region19: #{multivar_mlp_apply.1} parent=1 // pred_check_branch
      %41 = sbr.rel (0) target = $region21
    $region20: #{multivar_mlp_apply.1} parent=1 // pred_region
      _
    $region21: #{multivar_mlp_apply.1} parent=1 // pred_fallthru
      _
    // Predicated region
    $region22: #{multivar_mlp_apply.1} parent=1 // pred_check
      _
    $region23: #{multivar_mlp_apply.1} parent=1 // pred_check_branch
      %43 = sbr.rel (0) target = $region25
    $region24: #{multivar_mlp_apply.1} parent=1 // pred_region
      %44 = dma.done [#allocation3], 4096
    $region25: #{multivar_mlp_apply.1} parent=1 // pred_fallthru
      _
    // Predicated region
    $region26: #{multivar_mlp_apply.1} parent=1 // pred_check
      _
    $region27: #{multivar_mlp_apply.1} parent=1 // pred_check_branch
      %46 = sbr.rel (0) target = $region29
    $region28: #{multivar_mlp_apply.1} parent=1 // pred_region
      %47 = dma.done [#allocation5], 4096
    $region29: #{multivar_mlp_apply.1} parent=1 // pred_fallthru
      _
    %v48 = vld [vmem:[%s0] sm:$0xff]
    %v49 = vld [vmem:[#allocation2] sm:$0xff]
    %v50 = vld [vmem:[#allocation2 + $0x8] sm:$0xff]
    %v51 = vld [vmem:[#allocation2 + $0x10] sm:$0xff]
    %v52 = vld [vmem:[#allocation2 + $0x18] sm:$0xff]
    %v53 = vld [vmem:[#allocation2 + $0x20] sm:$0xff]
    %v54 = vld [vmem:[#allocation2 + $0x28] sm:$0xff]
    %v55 = vld [vmem:[#allocation2 + $0x30] sm:$0xff]
    %v56 = vld [vmem:[#allocation2 + $0x38] sm:$0xff]
    %v57 = vld [vmem:[#allocation2 + $0x40] sm:$0xff]
    %v58 = vld [vmem:[#allocation2 + $0x48] sm:$0xff]
    %v59 = vld [vmem:[#allocation2 + $0x50] sm:$0xff]
    %v60 = vld [vmem:[#allocation2 + $0x58] sm:$0xff]
    %v61 = vld [vmem:[#allocation2 + $0x60] sm:$0xff]
    %v62 = vld [vmem:[#allocation2 + $0x68] sm:$0xff]
    %v63 = vld [vmem:[#allocation2 + $0x70] sm:$0xff]
    %v64 = vld [vmem:[#allocation2 + $0x78] sm:$0xff]
    %v65 = vld [vmem:[#allocation2 + $0x80] sm:$0xff]
    %v66 = vld [vmem:[#allocation2 + $0x88] sm:$0xff]
    %v67 = vld [vmem:[#allocation2 + $0x90] sm:$0xff]
    %v68 = vld [vmem:[#allocation2 + $0x98] sm:$0xff]
    %v69 = vld [vmem:[#allocation2 + $0xa0] sm:$0xff]
    %v70 = vld [vmem:[#allocation2 + $0xa8] sm:$0xff]
    %v71 = vld [vmem:[#allocation2 + $0xb0] sm:$0xff]
    %v72 = vld [vmem:[#allocation2 + $0xb8] sm:$0xff]
    %v73 = vld [vmem:[#allocation2 + $0xc0] sm:$0xff]
    %v74 = vld [vmem:[#allocation2 + $0xc8] sm:$0xff]
    %v75 = vld [vmem:[#allocation2 + $0xd0] sm:$0xff]
    %v76 = vld [vmem:[#allocation2 + $0xd8] sm:$0xff]
    %v77 = vld [vmem:[#allocation2 + $0xe0] sm:$0xff]
    %v78 = vld [vmem:[#allocation2 + $0xe8] sm:$0xff]
    %v79 = vld [vmem:[#allocation2 + $0xf0] sm:$0xff]
    %v80 = vld [vmem:[#allocation2 + $0xf8] sm:$0xff]
    %v81 = vld [vmem:[%s2] sm:$0x3]
    %v83 = vlaneseq
    %v84 = vshrl.u32 %v83, 7
    %v85 = vsub.s32 0, %v84
    %v86 = vrot.slane %v81, %v85
    %v87 = vlaneseq
    %v88 = vshrl.u32 %v87, 7
    %v89 = vsub.s32 1, %v88
    %v90 = vrot.slane %v81, %v89
    %93 = vmatprep.subr.mxu0 %v50
    %94 = vmatpush1.msra.mxu0 %v49
    %95 = vmatprep.subr.mxu0 %v52
    %96 = vmatpush1.msra.mxu0 %v51
    %97 = vmatprep.subr.mxu0 %v54
    %98 = vmatpush1.msra.mxu0 %v53
    %99 = vmatprep.subr.mxu0 %v56
    %100 = vmatpush1.msra.mxu0 %v55
    %101 = vmatprep.subr.mxu0 %v58
    %102 = vmatpush1.msra.mxu0 %v57
    %103 = vmatprep.subr.mxu0 %v60
    %104 = vmatpush1.msra.mxu0 %v59
    %105 = vmatprep.subr.mxu0 %v62
    %106 = vmatpush1.msra.mxu0 %v61
    %107 = vmatprep.subr.mxu0 %v64
    %108 = vmatpush1.msra.mxu0 %v63
    %109 = vmatprep.subr.mxu0 %v66
    %110 = vmatpush1.msra.mxu0 %v65
    %111 = vmatprep.subr.mxu0 %v68
    %112 = vmatpush1.msra.mxu0 %v67
    %113 = vmatprep.subr.mxu0 %v70
    %114 = vmatpush1.msra.mxu0 %v69
    %115 = vmatprep.subr.mxu0 %v72
    %116 = vmatpush1.msra.mxu0 %v71
    %117 = vmatprep.subr.mxu0 %v74
    %118 = vmatpush1.msra.mxu0 %v73
    %119 = vmatprep.subr.mxu0 %v76
    %120 = vmatpush1.msra.mxu0 %v75
    %121 = vmatprep.subr.mxu0 %v78
    %122 = vmatpush1.msra.mxu0 %v77
    %123 = vmatprep.subr.mxu0 %v80
    %124 = vmatpush1.msra.mxu0 %v79
    %125 = vmatprep.subr.mxu0 0.0
    %126 = vmatpush1.msra.mxu0 0.0
    %127 = vmatprep.subr.mxu0 0.0
    %128 = vmatpush1.msra.mxu0 0.0
    %129 = vmatprep.subr.mxu0 0.0
    %130 = vmatpush1.msra.mxu0 0.0
    %131 = vmatprep.subr.mxu0 0.0
    %132 = vmatpush1.msra.mxu0 0.0
    %133 = vmatprep.subr.mxu0 0.0
    %134 = vmatpush1.msra.mxu0 0.0
    %135 = vmatprep.subr.mxu0 0.0
    %136 = vmatpush1.msra.mxu0 0.0
    %137 = vmatprep.subr.mxu0 0.0
    %138 = vmatpush1.msra.mxu0 0.0
    %139 = vmatprep.subr.mxu0 0.0
    %140 = vmatpush1.msra.mxu0 0.0
    %141 = vmatprep.subr.mxu0 0.0
    %142 = vmatpush1.msra.mxu0 0.0
    %143 = vmatprep.subr.mxu0 0.0
    %144 = vmatpush1.msra.mxu0 0.0
    %145 = vmatprep.subr.mxu0 0.0
    %146 = vmatpush1.msra.mxu0 0.0
    %147 = vmatprep.subr.mxu0 0.0
    %148 = vmatpush1.msra.mxu0 0.0
    %149 = vmatprep.subr.mxu0 0.0
    %150 = vmatpush1.msra.mxu0 0.0
    %151 = vmatprep.subr.mxu0 0.0
    %152 = vmatpush1.msra.mxu0 0.0
    %153 = vmatprep.subr.mxu0 0.0
    %154 = vmatpush1.msra.mxu0 0.0
    %155 = vmatprep.subr.mxu0 0.0
    %156 = vmatpush1.msra.mxu0 0.0
    %157 = vmatprep.mubr.f32.mxu0 0.0
    %158 = vmatmul.mubr.f32.gmra.mrb[0].mxu0 %v48
    %v159 = vpop.f32.mrb[0].mxu0
    %v160 = vadd.f32 %v86, %v159
    %v161 = vpop.f32.mrb[0].mxu0
    %v162 = vadd.f32 %v90, %v161
    %163 = vdwg.mxu0
    %v164 = vmax.f32 %v160, 0.0
    %v165 = vmax.f32 %v162, 0.0
    %v166 = vld [vmem:[#allocation4] sm:$0xff]
    %v167 = vld [vmem:[#allocation4 + $0x8] sm:$0xff]
    %v168 = vld [vmem:[#allocation4 + $0x10] sm:$0xff]
    %v169 = vld [vmem:[#allocation4 + $0x18] sm:$0xff]
    %v170 = vld [vmem:[#allocation4 + $0x20] sm:$0xff]
    %v171 = vld [vmem:[#allocation4 + $0x28] sm:$0xff]
    %v172 = vld [vmem:[#allocation4 + $0x30] sm:$0xff]
    %v173 = vld [vmem:[#allocation4 + $0x38] sm:$0xff]
    %v174 = vld [vmem:[#allocation4 + $0x40] sm:$0xff]
    %v175 = vld [vmem:[#allocation4 + $0x48] sm:$0xff]
    %v176 = vld [vmem:[#allocation4 + $0x50] sm:$0xff]
    %v177 = vld [vmem:[#allocation4 + $0x58] sm:$0xff]
    %v178 = vld [vmem:[#allocation4 + $0x60] sm:$0xff]
    %v179 = vld [vmem:[#allocation4 + $0x68] sm:$0xff]
    %v180 = vld [vmem:[#allocation4 + $0x70] sm:$0xff]
    %v181 = vld [vmem:[#allocation4 + $0x78] sm:$0xff]
    %v182 = vld [vmem:[#allocation4 + $0x80] sm:$0xff]
    %v183 = vld [vmem:[#allocation4 + $0x88] sm:$0xff]
    %v184 = vld [vmem:[#allocation4 + $0x90] sm:$0xff]
    %v185 = vld [vmem:[#allocation4 + $0x98] sm:$0xff]
    %v186 = vld [vmem:[#allocation4 + $0xa0] sm:$0xff]
    %v187 = vld [vmem:[#allocation4 + $0xa8] sm:$0xff]
    %v188 = vld [vmem:[#allocation4 + $0xb0] sm:$0xff]
    %v189 = vld [vmem:[#allocation4 + $0xb8] sm:$0xff]
    %v190 = vld [vmem:[#allocation4 + $0xc0] sm:$0xff]
    %v191 = vld [vmem:[#allocation4 + $0xc8] sm:$0xff]
    %v192 = vld [vmem:[#allocation4 + $0xd0] sm:$0xff]
    %v193 = vld [vmem:[#allocation4 + $0xd8] sm:$0xff]
    %v194 = vld [vmem:[#allocation4 + $0xe0] sm:$0xff]
    %v195 = vld [vmem:[#allocation4 + $0xe8] sm:$0xff]
    %v196 = vld [vmem:[#allocation4 + $0xf0] sm:$0xff]
    %v197 = vld [vmem:[#allocation4 + $0xf8] sm:$0xff]
    %v198 = vld [vmem:[%s4] sm:$0x1]
    %v200 = vlaneseq
    %v201 = vshrl.u32 %v200, 7
    %v202 = vsub.s32 0, %v201
    %v203 = vrot.slane %v198, %v202
    %205 = vmatprep.subr.mxu0 0.0
    %206 = vmatpush1.msra.mxu0 %v166
    %207 = vmatprep.subr.mxu0 0.0
    %208 = vmatpush1.msra.mxu0 %v167
    %209 = vmatprep.subr.mxu0 0.0
    %210 = vmatpush1.msra.mxu0 %v168
    %211 = vmatprep.subr.mxu0 0.0
    %212 = vmatpush1.msra.mxu0 %v169
    %213 = vmatprep.subr.mxu0 0.0
    %214 = vmatpush1.msra.mxu0 %v170
    %215 = vmatprep.subr.mxu0 0.0
    %216 = vmatpush1.msra.mxu0 %v171
    %217 = vmatprep.subr.mxu0 0.0
    %218 = vmatpush1.msra.mxu0 %v172
    %219 = vmatprep.subr.mxu0 0.0
    %220 = vmatpush1.msra.mxu0 %v173
    %221 = vmatprep.subr.mxu0 0.0
    %222 = vmatpush1.msra.mxu0 %v174
    %223 = vmatprep.subr.mxu0 0.0
    %224 = vmatpush1.msra.mxu0 %v175
    %225 = vmatprep.subr.mxu0 0.0
    %226 = vmatpush1.msra.mxu0 %v176
    %227 = vmatprep.subr.mxu0 0.0
    %228 = vmatpush1.msra.mxu0 %v177
    %229 = vmatprep.subr.mxu0 0.0
    %230 = vmatpush1.msra.mxu0 %v178
    %231 = vmatprep.subr.mxu0 0.0
    %232 = vmatpush1.msra.mxu0 %v179
    %233 = vmatprep.subr.mxu0 0.0
    %234 = vmatpush1.msra.mxu0 %v180
    %235 = vmatprep.subr.mxu0 0.0
    %236 = vmatpush1.msra.mxu0 %v181
    %237 = vmatprep.subr.mxu0 0.0
    %238 = vmatpush1.msra.mxu0 %v182
    %239 = vmatprep.subr.mxu0 0.0
    %240 = vmatpush1.msra.mxu0 %v183
    %241 = vmatprep.subr.mxu0 0.0
    %242 = vmatpush1.msra.mxu0 %v184
    %243 = vmatprep.subr.mxu0 0.0
    %244 = vmatpush1.msra.mxu0 %v185
    %245 = vmatprep.subr.mxu0 0.0
    %246 = vmatpush1.msra.mxu0 %v186
    %247 = vmatprep.subr.mxu0 0.0
    %248 = vmatpush1.msra.mxu0 %v187
    %249 = vmatprep.subr.mxu0 0.0
    %250 = vmatpush1.msra.mxu0 %v188
    %251 = vmatprep.subr.mxu0 0.0
    %252 = vmatpush1.msra.mxu0 %v189
    %253 = vmatprep.subr.mxu0 0.0
    %254 = vmatpush1.msra.mxu0 %v190
    %255 = vmatprep.subr.mxu0 0.0
    %256 = vmatpush1.msra.mxu0 %v191
    %257 = vmatprep.subr.mxu0 0.0
    %258 = vmatpush1.msra.mxu0 %v192
    %259 = vmatprep.subr.mxu0 0.0
    %260 = vmatpush1.msra.mxu0 %v193
    %261 = vmatprep.subr.mxu0 0.0
    %262 = vmatpush1.msra.mxu0 %v194
    %263 = vmatprep.subr.mxu0 0.0
    %264 = vmatpush1.msra.mxu0 %v195
    %265 = vmatprep.subr.mxu0 0.0
    %266 = vmatpush1.msra.mxu0 %v196
    %267 = vmatprep.subr.mxu0 0.0
    %268 = vmatpush1.msra.mxu0 %v197
    %269 = vmatprep.mubr.f32.mxu0 %v165
    %270 = vmatmul.mubr.f32.gmra.mrb[0].mxu0 %v164
    %v271 = vpop.f32.mrb[0].mxu0
    %v272 = vadd.f32 %v203, %v271
    %v273 = vpop.f32.mrb[0].mxu0
    %274 = vdwg.mxu0
    %275 = vst [vmem:[%s5] sm:$0xff] %v272
    // Predicated region
    $region30: #{multivar_mlp_apply.1} parent=1 // pred_check
      _
    $region31: #{multivar_mlp_apply.1} parent=1 // pred_check_branch
      %277 = sbr.rel (0) target = $region33
    $region32: #{multivar_mlp_apply.1} parent=1 // pred_region
      _
    $region33: #{multivar_mlp_apply.1} parent=1 // pred_fallthru
      _
    // Predicated region
    $region34: #{multivar_mlp_apply.1} parent=1 // pred_check
      _
    $region35: #{multivar_mlp_apply.1} parent=1 // pred_check_branch
      %279 = sbr.rel (0) target = $region37
    $region36: #{multivar_mlp_apply.1} parent=1 // pred_region
      _
    $region37: #{multivar_mlp_apply.1} parent=1 // pred_fallthru
      _
    %280 = vsyncpa [#allocation3], 1
    %281 = vsyncpa [#allocation5], 1

</llo_original>
